<compile_context>
chip_gen: v7x
topology: tpu7x:2x2x1
jax: 0.10.0
libtpu: 0.0.40
codegen_flags: <defaults>
</compile_context>

<pallas_src>
import functools

import jax
import jax.numpy as jnp
import numpy as np
from jax.experimental import pallas as pl
from jax.experimental.pallas import tpu as pltpu

# ----------------------------------------------------------------------------
# Deterministic parameter construction (mirrors the PyTorch __init__).
# ----------------------------------------------------------------------------
HAAR_KERNEL = jnp.array(
    [[[[1.0, 1.0], [1.0, 1.0]]],
     [[[1.0, -1.0], [1.0, -1.0]]],
     [[[1.0, 1.0], [-1.0, -1.0]]],
     [[[1.0, -1.0], [-1.0, 1.0]]]],
    dtype=jnp.float32,
)  # (4, 1, 2, 2)


def get_composite_kernel(base_kernel: jnp.ndarray, levels: int) -> jnp.ndarray:
    composite = base_kernel
    for l in range(1, levels):
        composite = composite.reshape(-1, 1, 2 ** l, 2 ** l)
        composite = jnp.einsum("aibc,djef->aidjbcef", composite, base_kernel)
        composite = composite.reshape(-1, 1, 2 ** (l + 1), 2 ** (l + 1))
    return composite  # (4**levels, 1, 2**levels, 2**levels)


# ----------------------------------------------------------------------------
# Pallas kernel:  out_tile (c_out, TILE_P) = W_scaled (c_out, k*k) @ P^T tile.
# Scale is pre-folded into W, so the body is a single MXU matmul + store.
# ----------------------------------------------------------------------------
def _haar_matmul_kernel(w_ref, pt_ref, o_ref):
    o_ref[...] = jnp.dot(
        w_ref[...], pt_ref[...], preferred_element_type=jnp.float32
    ).astype(o_ref.dtype)


def _pick_tile_p(P: int) -> int:
    # Largest lane-aligned tile (multiple of 128) that divides P, capped so
    # double-buffered in+out blocks stay far below the v7x scoped-VMEM budget.
    for t in (8192, 4096, 2048, 1024, 512, 256, 128):
        if P % t == 0:
            return t
    return P  # fall back to a single full-extent block (always legal)


def haar_forward(x: jnp.ndarray, composite_weight: jnp.ndarray, level: int) -> jnp.ndarray:
    """Equivalent of HaarWavelet.forward for x of shape (H, W) -> (4**L, H/2**L, W/2**L)."""
    k = 2 ** level
    c_out = 4 ** level
    kk = k * k
    H, W = x.shape
    assert H % k == 0 and W % k == 0, "spatial dims must be divisible by 2**level"
    Ho, Wo = H // k, W // k
    P = Ho * Wo

    # Fold the 1/4**L scale into the tiny constant weight (trace-time fold).
    w = (composite_weight.reshape(c_out, kk) * (1.0 / c_out)).astype(jnp.float32)

    # Single fused XLA rearrangement: image -> transposed patch matrix (k*k, P).
    # pt[a*k + b, ho*Wo + wo] = x[ho*k + a, wo*k + b]
    pt = (
        x.astype(jnp.float32)
        .reshape(Ho, k, Wo, k)
        .transpose(1, 3, 0, 2)
        .reshape(kk, P)
    )

    tile_p = _pick_tile_p(P)
    grid = (P // tile_p,)

    cost = pl.CostEstimate(
        flops=2 * P * kk * c_out,
        transcendentals=0,
        bytes_accessed=(P * kk + kk * c_out + P * c_out) * 4,
    )

    out_flat = pl.pallas_call(
        _haar_matmul_kernel,
        out_shape=jax.ShapeDtypeStruct((c_out, P), jnp.float32),
        grid=grid,
        in_specs=[
            pl.BlockSpec((c_out, kk), lambda i: (0, 0)),    # tiny weight, resident
            pl.BlockSpec((kk, tile_p), lambda i: (0, i)),   # lane-dense patch tile
        ],
        out_specs=pl.BlockSpec((c_out, tile_p), lambda i: (0, i)),  # lane-dense out
        compiler_params=pltpu.CompilerParams(
            dimension_semantics=("parallel",),
            vmem_limit_bytes=32 * 1024 * 1024,
        ),
        cost_estimate=cost,
    )(w, pt)

    # (C_out, Ho*Wo) -> (C_out, Ho, Wo): free row-major reshape (no transpose pass).
    return out_flat.reshape(c_out, Ho, Wo)


# ----------------------------------------------------------------------------
# Pure-JAX reference (same math, no Pallas) for a correctness check.
# ----------------------------------------------------------------------------
def haar_forward_ref(x, composite_weight, level):
    k = 2 ** level
    c_out = 4 ** level
    H, W = x.shape
    Ho, Wo = H // k, W // k
    patches = x.reshape(Ho, k, Wo, k).transpose(0, 2, 1, 3).reshape(Ho * Wo, k * k)
    w = composite_weight.reshape(c_out, k * k)
    out = (patches @ w.T) * (1.0 / c_out)
    return out.reshape(Ho, Wo, c_out).transpose(2, 0, 1)


if __name__ == "__main__":
    level = 2
    H = W = 64  # small spatial size, divisible by 2**level; P=256 -> grid of 2 tiles

    key = jax.random.PRNGKey(0)
    x = jax.random.normal(key, (H, W), dtype=jnp.float32)

    composite_weight = get_composite_kernel(HAAR_KERNEL, level)  # (16, 1, 4, 4)

    y = haar_forward(x, composite_weight, level)
    y = jax.block_until_ready(y)

    y_ref = haar_forward_ref(x, composite_weight, level)
    np.testing.assert_allclose(np.asarray(y), np.asarray(y_ref), rtol=1e-5, atol=1e-5)

    assert y.shape == (4 ** level, H // 2 ** level, W // 2 ** level)
    print("KERNEL_OK")
</pallas_src>

<mosaic_0001>
module attributes {stable_mosaic.version = 11 : i64} {
  func.func @_haar_matmul_kernel(%arg0: i32, %arg1: memref<16x16xf32, #tpu.memory_space<vmem>>, %arg2: memref<16x256xf32, #tpu.memory_space<vmem>>, %arg3: memref<16x256xf32, #tpu.memory_space<vmem>>) attributes {dimension_semantics = [#tpu.dimension_semantics<parallel>], iteration_bounds = array<i64: 1>, scalar_prefetch = 0 : i64, scratch_operands = 0 : i64, tpu.core_type = #tpu.core_type<tc>, window_params = [{pipeline_mode = #tpu.pipeline_mode<synchronous>, transform_indices = @transform_0, window_bounds = array<i64: 16, 16>}, {transform_indices = @transform_1, window_bounds = array<i64: 16, 256>}, {transform_indices = @transform_2, window_bounds = array<i64: 16, 256>}]} {
    %c0 = arith.constant 0 : index
    %c0_0 = arith.constant 0 : index
    %0 = vector.load %arg1[%c0, %c0_0] : memref<16x16xf32, #tpu.memory_space<vmem>>, vector<16x16xf32>
    %c0_1 = arith.constant 0 : index
    %c0_2 = arith.constant 0 : index
    %1 = vector.load %arg2[%c0_1, %c0_2] : memref<16x256xf32, #tpu.memory_space<vmem>>, vector<16x256xf32>
    %cst = arith.constant dense<0.000000e+00> : vector<16x256xf32>
    %2 = tpu.matmul %0, %1, %cst {dimension_numbers = #tpu.dot_dimension_numbers<[1], [0], [0], [1], [0, 0, 1, 1], [], []>} : vector<16x16xf32>, vector<16x256xf32>, vector<16x256xf32> -> vector<16x256xf32>
    %c0_3 = arith.constant 0 : index
    %c0_4 = arith.constant 0 : index
    %3 = vector.load %arg3[%c0_3, %c0_4] : memref<16x256xf32, #tpu.memory_space<vmem>>, vector<16x256xf32>
    tpu.vector_store %arg3[%c0_3, %c0_4], %2 {strides = array<i32>} : memref<16x256xf32, #tpu.memory_space<vmem>>, vector<16x256xf32>,
    return
  }
  func.func @transform_0(%arg0: i32) -> (i32, i32) {
    %c0_i32 = arith.constant 0 : i32
    %c0_i32_0 = arith.constant 0 : i32
    %c0_i32_1 = arith.constant 0 : i32
    return %c0_i32, %c0_i32_0 : i32, i32
  }
  func.func @transform_1(%arg0: i32) -> (i32, i32) {
    %c0_i32 = arith.constant 0 : i32
    %c0_i32_0 = arith.constant 0 : i32
    return %c0_i32, %arg0 : i32, i32
  }
  func.func @transform_2(%arg0: i32) -> (i32, i32) {
    %c0_i32 = arith.constant 0 : i32
    %c0_i32_0 = arith.constant 0 : i32
    return %c0_i32, %arg0 : i32, i32
  }
}

</mosaic_0001>

<llo_original>
// kernel: tpu_custom_call.1
$region0: #{tpu_custom_call.1}
  #allocation0 [shape = 'u32[]', space=smem, size = 0x4, offset = 0x4, fixed_abs, tag = 'smem constant byte address 0x4 - core index']
  #allocation1 [shape = 'u32[144,128]{1,0:T(1,128)}', space=vmem, size = 0x12000, scoped, tag = 'internal scratch']
  %s0 = inlined_call_operand.hbm [shape: f32[16,16], index: 0, kind: input, shape index: {}]
  %s1 = inlined_call_operand.hbm [shape: f32[16,256], index: 1, kind: input, shape index: {}]
  %s2 = inlined_call_operand.hbm [shape: f32[16,256], index: 2, kind: output, shape index: {}]
  %s3 = sld [smem:[#allocation0]]
  $region26: #{tpu_custom_call.1} parent=0
    _
  %s5 = ssub.s32 1, %s3
  %s6 = scalar_select 0, %s5, %s3
  $region1: #{tpu_custom_call.1} parent=0
    #allocation2 [shape = 'u8[8192]{0}', space=vmem, size = 0x2000, scoped, tag = 'input window, operand 0, single buffered']
    #allocation3 [shape = 's32[1]{0}', space=sflag, size = 0x4, scoped, tag = 'scoped memory for tpu_custom_call.1']
    #allocation4 [shape = 's32[1]{0}', space=sflag, size = 0x4, scoped, tag = 'scoped memory for tpu_custom_call.1']
    #allocation5 [shape = 'u8[16384]{0}', space=vmem, size = 0x4000, scoped, tag = 'input window, operand 1, single buffered']
    #allocation6 [shape = 's32[1]{0}', space=sflag, size = 0x4, scoped, tag = 'scoped memory for tpu_custom_call.1']
    #allocation7 [shape = 'u8[16384]{0}', space=vmem, size = 0x4000, scoped, tag = 'output window, operand 0, single buffered']
    %7 = vsyncpa [#allocation3], 0
    %8 = vsyncpa [#allocation6], 0
    %9 = vsyncpa [#allocation4], 0
    // Predicated region
    $region2: #{tpu_custom_call.1} parent=1 // pred_check
      _
    $region3: #{tpu_custom_call.1} parent=1 // pred_check_branch
      %11 = sbr.rel (0) target = $region5
    $region4: #{tpu_custom_call.1} parent=1 // pred_region
      %s13 = ssub.s32 256, 256
      %14 = vsyncadd [#allocation3], %s13
      %s15 = sshll.u32 [#allocation2], 4
      %s16 = int_to_ptr.vmem [resolvable:$true] %s15
      %21 = dma.hbm_to_vmem [thread:$0]  %s0, 256, %s16, [#allocation3], 128, 128, 8
    $region5: #{tpu_custom_call.1} parent=1 // pred_fallthru
      _
    // Predicated region
    $region6: #{tpu_custom_call.1} parent=1 // pred_check
      _
    $region7: #{tpu_custom_call.1} parent=1 // pred_check_branch
      %23 = sbr.rel (0) target = $region9
    $region8: #{tpu_custom_call.1} parent=1 // pred_region
      %s25 = ssub.s32 512, 512
      %26 = vsyncadd [#allocation6], %s25
      %s27 = sshll.u32 [#allocation5], 4
      %s28 = int_to_ptr.vmem [resolvable:$true] %s27
      %33 = dma.hbm_to_vmem [thread:$0]  %s1, 512, %s28, [#allocation6], 256, 256, 16
    $region9: #{tpu_custom_call.1} parent=1 // pred_fallthru
      _
    // Predicated region
    $region10: #{tpu_custom_call.1} parent=1 // pred_check
      _
    $region11: #{tpu_custom_call.1} parent=1 // pred_check_branch
      %35 = sbr.rel (0) target = $region13
    $region12: #{tpu_custom_call.1} parent=1 // pred_region
      %36 = dma.done [#allocation3], 256
    $region13: #{tpu_custom_call.1} parent=1 // pred_fallthru
      _
    // Predicated region
    $region14: #{tpu_custom_call.1} parent=1 // pred_check
      _
    $region15: #{tpu_custom_call.1} parent=1 // pred_check_branch
      %38 = sbr.rel (0) target = $region17
    $region16: #{tpu_custom_call.1} parent=1 // pred_region
      %39 = dma.done [#allocation6], 512
    $region17: #{tpu_custom_call.1} parent=1 // pred_fallthru
      _
    %v40 = vld [vmem:[#allocation2] sm:$0xff]
    %v41 = vld [vmem:[#allocation2 + $0x8] sm:$0xff]
    %v42 = vld [vmem:[#allocation5] sm:$0xff]
    %v43 = vld [vmem:[#allocation5 + $0x8] sm:$0xff]
    %v44 = vld [vmem:[#allocation5 + $0x10] sm:$0xff]
    %v45 = vld [vmem:[#allocation5 + $0x18] sm:$0xff]
    %vm46 = vcmask 130048
    %v48 = vsel %vm46, %v40, 0
    %v51 = vsel %vm46, %v41, 0
    %53 = vmatprep.subr.mxu0 %v43
    %54 = vmatpush1.msra.mxu0 %v42
    %55 = vmatprep.subr.mxu0 %v45
    %56 = vmatpush1.msra.mxu0 %v44
    %57 = vmatprep.subr.mxu0 0.0
    %58 = vmatpush1.msra.mxu0 0.0
    %59 = vmatprep.subr.mxu0 0.0
    %60 = vmatpush1.msra.mxu0 0.0
    %61 = vmatprep.subr.mxu0 0.0
    %62 = vmatpush1.msra.mxu0 0.0
    %63 = vmatprep.subr.mxu0 0.0
    %64 = vmatpush1.msra.mxu0 0.0
    %65 = vmatprep.subr.mxu0 0.0
    %66 = vmatpush1.msra.mxu0 0.0
    %67 = vmatprep.subr.mxu0 0.0
    %68 = vmatpush1.msra.mxu0 0.0
    %69 = vmatprep.subr.mxu0 0.0
    %70 = vmatpush1.msra.mxu0 0.0
    %71 = vmatprep.subr.mxu0 0.0
    %72 = vmatpush1.msra.mxu0 0.0
    %73 = vmatprep.subr.mxu0 0.0
    %74 = vmatpush1.msra.mxu0 0.0
    %75 = vmatprep.subr.mxu0 0.0
    %76 = vmatpush1.msra.mxu0 0.0
    %77 = vmatprep.subr.mxu0 0.0
    %78 = vmatpush1.msra.mxu0 0.0
    %79 = vmatprep.subr.mxu0 0.0
    %80 = vmatpush1.msra.mxu0 0.0
    %81 = vmatprep.subr.mxu0 0.0
    %82 = vmatpush1.msra.mxu0 0.0
    %83 = vmatprep.subr.mxu0 0.0
    %84 = vmatpush1.msra.mxu0 0.0
    %85 = vmatprep.subr.mxu0 0.0
    %86 = vmatpush1.msra.mxu0 0.0
    %87 = vmatprep.subr.mxu0 0.0
    %88 = vmatpush1.msra.mxu0 0.0
    %89 = vmatprep.subr.mxu0 0.0
    %90 = vmatpush1.msra.mxu0 0.0
    %91 = vmatprep.subr.mxu0 0.0
    %92 = vmatpush1.msra.mxu0 0.0
    %93 = vmatprep.subr.mxu0 0.0
    %94 = vmatpush1.msra.mxu0 0.0
    %95 = vmatprep.subr.mxu0 0.0
    %96 = vmatpush1.msra.mxu0 0.0
    %97 = vmatprep.subr.mxu0 0.0
    %98 = vmatpush1.msra.mxu0 0.0
    %99 = vmatprep.subr.mxu0 0.0
    %100 = vmatpush1.msra.mxu0 0.0
    %101 = vmatprep.subr.mxu0 0.0
    %102 = vmatpush1.msra.mxu0 0.0
    %103 = vmatprep.subr.mxu0 0.0
    %104 = vmatpush1.msra.mxu0 0.0
    %105 = vmatprep.subr.mxu0 0.0
    %106 = vmatpush1.msra.mxu0 0.0
    %107 = vmatprep.subr.mxu0 0.0
    %108 = vmatpush1.msra.mxu0 0.0
    %109 = vmatprep.subr.mxu0 0.0
    %110 = vmatpush1.msra.mxu0 0.0
    %111 = vmatprep.subr.mxu0 0.0
    %112 = vmatpush1.msra.mxu0 0.0
    %113 = vmatprep.subr.mxu0 0.0
    %114 = vmatpush1.msra.mxu0 0.0
    %115 = vmatprep.subr.mxu0 0.0
    %116 = vmatpush1.msra.mxu0 0.0
    %117 = vmatprep.mubr.f32.mxu0 0.0
    %118 = vmatmul.mubr.f32.gmra.mrb[0].mxu0 %v48
    %v119 = vpop.f32.mrb[0].mxu0
    %v120 = vadd.f32 0.0, %v119
    %v121 = vpop.f32.mrb[0].mxu0
    %v122 = vadd.f32 0.0, %v121
    %123 = vmatprep.mubr.f32.mxu0 0.0
    %124 = vmatmul.mubr.f32.gmra.mrb[0].mxu0 %v51
    %v125 = vpop.f32.mrb[0].mxu0
    %v126 = vadd.f32 0.0, %v125
    %v127 = vpop.f32.mrb[0].mxu0
    %v128 = vadd.f32 0.0, %v127
    %129 = vdwg.mxu0
    %130 = vst [vmem:[#allocation7] sm:$0xff] %v120
    %131 = vst [vmem:[#allocation7 + $0x8] sm:$0xff] %v122
    %132 = vst [vmem:[#allocation7 + $0x10] sm:$0xff] %v126
    %133 = vst [vmem:[#allocation7 + $0x18] sm:$0xff] %v128
    // Predicated region
    $region18: #{tpu_custom_call.1} parent=1 // pred_check
      _
    $region19: #{tpu_custom_call.1} parent=1 // pred_check_branch
      %135 = sbr.rel (0) target = $region21
    $region20: #{tpu_custom_call.1} parent=1 // pred_region
      %s137 = ssub.s32 512, 512
      %138 = vsyncadd [#allocation4], %s137
      %s139 = sshll.u32 [#allocation7], 4
      %s140 = int_to_ptr.vmem [resolvable:$true] %s139
      %145 = dma.vmem_to_hbm [thread:$0]  %s140, 512, %s2, [#allocation4], 256, 256, 16
    $region21: #{tpu_custom_call.1} parent=1 // pred_fallthru
      _
    // Predicated region
    $region22: #{tpu_custom_call.1} parent=1 // pred_check
      _
    $region23: #{tpu_custom_call.1} parent=1 // pred_check_branch
      %147 = sbr.rel (0) target = $region25
    $region24: #{tpu_custom_call.1} parent=1 // pred_region
      %148 = dma.done [#allocation4], 512
    $region25: #{tpu_custom_call.1} parent=1 // pred_fallthru
      _
    %149 = vsyncpa [#allocation3], 1
    %150 = vsyncpa [#allocation6], 1
    %151 = vsyncpa [#allocation4], 1

</llo_original>
